<compile_context>
chip_gen: v7x
topology: tpu7x:2x2x1
jax: 0.10.0
libtpu: 0.0.40
codegen_flags: <defaults>
</compile_context>

<pallas_src>
import jax
import jax.numpy as jnp
from jax.experimental import pallas as pl
from jax.experimental.pallas import tpu as pltpu

IN_FEATURES = 16
OUT_FEATURES = 2
PACK = 8                      # batch rows packed per lane-dense row
LANES = PACK * IN_FEATURES    # 8 * 16 = 128 lanes


def _round_up(n, m):
    return ((n + m - 1) // m) * m


def _cls_kernel(x_ref, w_ref, b_ref, o_ref):
    # x_ref: (tb8, 128) f32 VMEM -- packed rows: x_ref[r, 16*j + k] = x[8r + j, k]
    # w_ref: (128, 1)   f32 VMEM -- (weight[1] - weight[0]) tiled 8x (matches packing)
    # b_ref: (1,)       f32 SMEM -- bias[1] - bias[0]
    # o_ref: (2, 8, tb8) f32 VMEM -- [class, packed slot j, packed row r]; batch = 8r + j

    # Transpose the dense tile so the packed feature index sits on sublanes and the
    # packed-row index on lanes (XLU slot is idle in this HBM-bound kernel).
    xt = jnp.transpose(x_ref[...])                      # (128, tb8)

    # ReLU + folded weight-difference multiply (dense VPU work).
    y = jnp.maximum(xt, 0.0) * w_ref[...]               # (128, tb8)

    # Segmented 16-sublane sums: sublane 16*j + k holds feature k of batch slot j.
    parts = [
        jnp.sum(y[16 * j:16 * (j + 1), :], axis=0, keepdims=True)  # (1, tb8)
        for j in range(PACK)
    ]
    d = jnp.concatenate(parts, axis=0) + b_ref[0]        # (8, tb8) = h1 - h0

    # Closed-form, numerically stable 2-class log_softmax:
    #   out0 = -softplus(d),  out1 = d - softplus(d)
    #   softplus(d) = max(d, 0) + log1p(exp(-|d|))
    sp = jnp.maximum(d, 0.0) + jnp.log1p(jnp.exp(-jnp.abs(d)))

    # Two direct lane-dense sub-stores (no sublane concat of the output).
    o_ref[0, :, :] = -sp
    o_ref[1, :, :] = d - sp


def cls_forward(x, weight, bias, *, block_b=32768):
    """x: (B, 16) f32; weight: (2, 16) f32 (PyTorch layout); bias: (2,) f32."""
    B = x.shape[0]
    assert x.shape[1] == IN_FEATURES
    x = x.astype(jnp.float32)
    weight = weight.astype(jnp.float32)
    bias = bias.astype(jnp.float32)

    # Fold the 2-class linear layer: only d = h1 - h0 is needed downstream.
    wd = weight[1] - weight[0]                           # (16,)
    bd = (bias[1] - bias[0]).reshape(1)                  # (1,) SMEM scalar
    w128 = jnp.tile(wd, PACK).reshape(LANES, 1)          # (128, 1), matches packing

    # Copy-free lane-dense repack: (B, 16) -> (B/8, 128).  Only pads (one small
    # copy) when B is not a multiple of 8.
    b_pad8 = _round_up(max(B, 1), PACK)
    xp = x if b_pad8 == B else jnp.pad(x, ((0, b_pad8 - B), (0, 0)))
    n_rows = b_pad8 // PACK
    xr = xp.reshape(n_rows, LANES)

    # Tile of tb8 packed rows == 8*tb8 batch rows; multiple of 128 so the in-kernel
    # transpose stays on native (8,128) tiles.  Large B uses pl.cdiv + a ragged
    # final block (no wrapper pad); tiny B pads up to a single tile (cheap).
    tb8 = _round_up(min(max(block_b, PACK) // PACK, n_rows), 128)
    if n_rows < tb8:
        xr = jnp.pad(xr, ((0, tb8 - n_rows), (0, 0)))
        n_rows = tb8

    out = pl.pallas_call(
        _cls_kernel,
        out_shape=jax.ShapeDtypeStruct((OUT_FEATURES, PACK, n_rows), jnp.float32),
        grid=(pl.cdiv(n_rows, tb8),),
        in_specs=[
            # x tile: new batch slab per grid step (double-buffered by Pallas).
            pl.BlockSpec((tb8, LANES), lambda i: (i, 0)),
            # folded weight column: constant index map -> VMEM-resident.
            pl.BlockSpec((LANES, 1), lambda i: (0, 0)),
            # folded bias: scalar in SMEM.
            pl.BlockSpec(memory_space=pltpu.MemorySpace.SMEM),
        ],
        out_specs=pl.BlockSpec((OUT_FEATURES, PACK, tb8), lambda i: (0, 0, i)),
        compiler_params=pltpu.CompilerParams(
            dimension_semantics=("parallel",),
        ),
    )(xr, w128, bd)

    # (2, 8, n_rows) -> (B, 2): out[c, j, r] is batch element 8r + j, class c.
    # This pass only touches 8 B/row (vs 64 B/row of input) -- negligible.
    return jnp.transpose(out, (2, 1, 0)).reshape(n_rows * PACK, OUT_FEATURES)[:B]


def _reference(x, weight, bias):
    h = jnp.maximum(x, 0.0) @ weight.T + bias
    return jax.nn.log_softmax(h, axis=1)


if __name__ == "__main__":
    key = jax.random.PRNGKey(0)
    kx, kw, kb, kx2, kx3 = jax.random.split(key, 5)

    # Parameters shaped like nn.Linear(16, 2), PyTorch-style U(-1/sqrt(in), 1/sqrt(in)).
    bound = 1.0 / (IN_FEATURES ** 0.5)
    weight = jax.random.uniform(
        kw, (OUT_FEATURES, IN_FEATURES), jnp.float32, minval=-bound, maxval=bound
    )
    bias = jax.random.uniform(
        kb, (OUT_FEATURES,), jnp.float32, minval=-bound, maxval=bound
    )

    # Primary small example: batch=8, features=16 (single padded tile).
    x = jax.random.normal(kx, (8, IN_FEATURES), jnp.float32)
    out = jax.block_until_ready(cls_forward(x, weight, bias))
    ref = _reference(x, weight, bias)
    assert out.shape == (8, OUT_FEATURES)
    assert jnp.allclose(out, ref, atol=1e-5, rtol=1e-5)

    # Batch not a multiple of 8 (row-pad path), still a single tile.
    x2 = jax.random.normal(kx2, (300, IN_FEATURES), jnp.float32)
    out2 = jax.block_until_ready(cls_forward(x2, weight, bias))
    ref2 = _reference(x2, weight, bias)
    assert out2.shape == (300, OUT_FEATURES)
    assert jnp.allclose(out2, ref2, atol=1e-5, rtol=1e-5)

    # Multi-tile grid with a ragged final block (no wrapper-side batch padding):
    # block_b=1024 -> tb8=128, n_rows=260, grid=(3,).
    x3 = jax.random.normal(kx3, (2080, IN_FEATURES), jnp.float32)
    out3 = jax.block_until_ready(cls_forward(x3, weight, bias, block_b=1024))
    ref3 = _reference(x3, weight, bias)
    assert out3.shape == (2080, OUT_FEATURES)
    assert jnp.allclose(out3, ref3, atol=1e-5, rtol=1e-5)

    print("KERNEL_OK")
</pallas_src>

<mosaic_0001>
module attributes {stable_mosaic.version = 11 : i64} {
  func.func @_cls_kernel(%arg0: i32, %arg1: memref<128x128xf32, #tpu.memory_space<vmem>>, %arg2: memref<128x1xf32, #tpu.memory_space<vmem>>, %arg3: memref<1xf32, #tpu.memory_space<smem>>, %arg4: memref<2x8x128xf32, #tpu.memory_space<vmem>>) attributes {dimension_semantics = [#tpu.dimension_semantics<parallel>], iteration_bounds = array<i64: 1>, scalar_prefetch = 0 : i64, scratch_operands = 0 : i64, tpu.core_type = #tpu.core_type<tc>, window_params = [{transform_indices = @transform_0, window_bounds = array<i64: 128, 128>}, {pipeline_mode = #tpu.pipeline_mode<synchronous>, transform_indices = @transform_1, window_bounds = array<i64: 128, 1>}, {transform_indices = @transform_2, window_bounds = array<i64: 1>}, {transform_indices = @transform_3, window_bounds = array<i64: 2, 8, 128>}]} {
    %c0 = arith.constant 0 : index
    %c0_0 = arith.constant 0 : index
    %0 = vector.load %arg1[%c0, %c0_0] : memref<128x128xf32, #tpu.memory_space<vmem>>, vector<128x128xf32>
    %1 = tpu.transpose %0, [1, 0] : vector<128x128xf32> -> vector<128x128xf32>
    %cst = arith.constant 0.000000e+00 : f32
    %2 = vector.broadcast %cst : f32 to vector<128x128xf32>
    %3 = arith.maximumf %1, %2 : vector<128x128xf32>
    %c0_1 = arith.constant 0 : index
    %c0_2 = arith.constant 0 : index
    %4 = vector.load %arg2[%c0_1, %c0_2] : memref<128x1xf32, #tpu.memory_space<vmem>>, vector<128x1xf32>
    %5 = vector.broadcast %4 : vector<128x1xf32> to vector<128x128xf32>
    %6 = arith.mulf %3, %5 : vector<128x128xf32>
    %7 = vector.extract_strided_slice %6 {offsets = [0, 0], sizes = [16, 128], strides = [1, 1]} : vector<128x128xf32> to vector<16x128xf32>
    %cst_3 = arith.constant dense<0.000000e+00> : vector<128xf32>
    %8 = vector.multi_reduction <add>, %7, %cst_3 [0] : vector<16x128xf32> to vector<128xf32>
    %9 = vector.shape_cast %8 : vector<128xf32> to vector<1x128xf32>
    %10 = vector.extract_strided_slice %6 {offsets = [16, 0], sizes = [16, 128], strides = [1, 1]} : vector<128x128xf32> to vector<16x128xf32>
    %cst_4 = arith.constant dense<0.000000e+00> : vector<128xf32>
    %11 = vector.multi_reduction <add>, %10, %cst_4 [0] : vector<16x128xf32> to vector<128xf32>
    %12 = vector.shape_cast %11 : vector<128xf32> to vector<1x128xf32>
    %13 = vector.extract_strided_slice %6 {offsets = [32, 0], sizes = [16, 128], strides = [1, 1]} : vector<128x128xf32> to vector<16x128xf32>
    %cst_5 = arith.constant dense<0.000000e+00> : vector<128xf32>
    %14 = vector.multi_reduction <add>, %13, %cst_5 [0] : vector<16x128xf32> to vector<128xf32>
    %15 = vector.shape_cast %14 : vector<128xf32> to vector<1x128xf32>
    %16 = vector.extract_strided_slice %6 {offsets = [48, 0], sizes = [16, 128], strides = [1, 1]} : vector<128x128xf32> to vector<16x128xf32>
    %cst_6 = arith.constant dense<0.000000e+00> : vector<128xf32>
    %17 = vector.multi_reduction <add>, %16, %cst_6 [0] : vector<16x128xf32> to vector<128xf32>
    %18 = vector.shape_cast %17 : vector<128xf32> to vector<1x128xf32>
    %19 = vector.extract_strided_slice %6 {offsets = [64, 0], sizes = [16, 128], strides = [1, 1]} : vector<128x128xf32> to vector<16x128xf32>
    %cst_7 = arith.constant dense<0.000000e+00> : vector<128xf32>
    %20 = vector.multi_reduction <add>, %19, %cst_7 [0] : vector<16x128xf32> to vector<128xf32>
    %21 = vector.shape_cast %20 : vector<128xf32> to vector<1x128xf32>
    %22 = vector.extract_strided_slice %6 {offsets = [80, 0], sizes = [16, 128], strides = [1, 1]} : vector<128x128xf32> to vector<16x128xf32>
    %cst_8 = arith.constant dense<0.000000e+00> : vector<128xf32>
    %23 = vector.multi_reduction <add>, %22, %cst_8 [0] : vector<16x128xf32> to vector<128xf32>
    %24 = vector.shape_cast %23 : vector<128xf32> to vector<1x128xf32>
    %25 = vector.extract_strided_slice %6 {offsets = [96, 0], sizes = [16, 128], strides = [1, 1]} : vector<128x128xf32> to vector<16x128xf32>
    %cst_9 = arith.constant dense<0.000000e+00> : vector<128xf32>
    %26 = vector.multi_reduction <add>, %25, %cst_9 [0] : vector<16x128xf32> to vector<128xf32>
    %27 = vector.shape_cast %26 : vector<128xf32> to vector<1x128xf32>
    %28 = vector.extract_strided_slice %6 {offsets = [112, 0], sizes = [16, 128], strides = [1, 1]} : vector<128x128xf32> to vector<16x128xf32>
    %cst_10 = arith.constant dense<0.000000e+00> : vector<128xf32>
    %29 = vector.multi_reduction <add>, %28, %cst_10 [0] : vector<16x128xf32> to vector<128xf32>
    %30 = vector.shape_cast %29 : vector<128xf32> to vector<1x128xf32>
    %31 = tpu.concatenate %9, %12, %15, %18, %21, %24, %27, %30 in 0 : vector<1x128xf32>, vector<1x128xf32>, vector<1x128xf32>, vector<1x128xf32>, vector<1x128xf32>, vector<1x128xf32>, vector<1x128xf32>, vector<1x128xf32> -> vector<8x128xf32>
    %c0_11 = arith.constant 0 : index
    %32 = memref.load %arg3[%c0_11] : memref<1xf32, #tpu.memory_space<smem>>
    %33 = vector.broadcast %32 : f32 to vector<8x128xf32>
    %34 = arith.addf %31, %33 : vector<8x128xf32>
    %cst_12 = arith.constant 0.000000e+00 : f32
    %35 = vector.broadcast %cst_12 : f32 to vector<8x128xf32>
    %36 = arith.maximumf %34, %35 : vector<8x128xf32>
    %37 = math.absf %34 : vector<8x128xf32>
    %cst_13 = arith.constant 0.000000e+00 : f32
    %38 = vector.broadcast %cst_13 : f32 to vector<8x128xf32>
    %39 = arith.subf %38, %37 : vector<8x128xf32>
    %40 = math.exp %39 : vector<8x128xf32>
    %41 = math.log1p %40 : vector<8x128xf32>
    %42 = arith.addf %36, %41 : vector<8x128xf32>
    %cst_14 = arith.constant 0.000000e+00 : f32
    %43 = vector.broadcast %cst_14 : f32 to vector<8x128xf32>
    %44 = arith.subf %43, %42 : vector<8x128xf32>
    %c0_15 = arith.constant 0 : index
    %c0_16 = arith.constant 0 : index
    %c0_17 = arith.constant 0 : index
    %45 = vector.load %arg4[%c0_15, %c0_16, %c0_17] : memref<2x8x128xf32, #tpu.memory_space<vmem>>, vector<1x8x128xf32>
    %46 = vector.shape_cast %45 : vector<1x8x128xf32> to vector<8x128xf32>
    %47 = vector.shape_cast %44 : vector<8x128xf32> to vector<1x8x128xf32>
    tpu.vector_store %arg4[%c0_15, %c0_16, %c0_17], %47 {strides = array<i32>} : memref<2x8x128xf32, #tpu.memory_space<vmem>>, vector<1x8x128xf32>,
    %48 = arith.subf %34, %42 : vector<8x128xf32>
    %c1 = arith.constant 1 : index
    %c0_18 = arith.constant 0 : index
    %c0_19 = arith.constant 0 : index
    %49 = vector.load %arg4[%c1, %c0_18, %c0_19] : memref<2x8x128xf32, #tpu.memory_space<vmem>>, vector<1x8x128xf32>
    %50 = vector.shape_cast %49 : vector<1x8x128xf32> to vector<8x128xf32>
    %51 = vector.shape_cast %48 : vector<8x128xf32> to vector<1x8x128xf32>
    tpu.vector_store %arg4[%c1, %c0_18, %c0_19], %51 {strides = array<i32>} : memref<2x8x128xf32, #tpu.memory_space<vmem>>, vector<1x8x128xf32>,
    return
  }
  func.func @transform_0(%arg0: i32) -> (i32, i32) {
    %c0_i32 = arith.constant 0 : i32
    %c0_i32_0 = arith.constant 0 : i32
    return %arg0, %c0_i32 : i32, i32
  }
  func.func @transform_1(%arg0: i32) -> (i32, i32) {
    %c0_i32 = arith.constant 0 : i32
    %c0_i32_0 = arith.constant 0 : i32
    %c0_i32_1 = arith.constant 0 : i32
    return %c0_i32, %c0_i32_0 : i32, i32
  }
  func.func @transform_2(%arg0: i32) -> i32 {
    %c0_i32 = arith.constant 0 : i32
    %c0_i32_0 = arith.constant 0 : i32
    return %c0_i32 : i32
  }
  func.func @transform_3(%arg0: i32) -> (i32, i32, i32) {
    %c0_i32 = arith.constant 0 : i32
    %c0_i32_0 = arith.constant 0 : i32
    %c0_i32_1 = arith.constant 0 : i32
    return %c0_i32, %c0_i32_0, %arg0 : i32, i32, i32
  }
}

</mosaic_0001>

<llo_original>
// kernel: tpu_custom_call.1
$region0: #{tpu_custom_call.1}
  #allocation0 [shape = 'u32[]', space=smem, size = 0x4, offset = 0x4, fixed_abs, tag = 'smem constant byte address 0x4 - core index']
  #allocation1 [shape = 'u32[144,128]{1,0:T(1,128)}', space=vmem, size = 0x12000, scoped, tag = 'internal scratch']
  #allocation2 [shape = 'f32[1]{0:T(128)S(6)}', space=smem, size = 0x200, scoped, tag = 'scoped memory for tpu_custom_call.1']
  %s0 = inlined_call_operand.vmem [shape: f32[128,128], index: 0, kind: input, shape index: {}]
  %s1 = inlined_call_operand.vmem [shape: f32[128,1], index: 1, kind: input, shape index: {}]
  %s2 = inlined_call_operand.<no memory space> [shape: f32[1], index: 2, kind: input, shape index: {}]
  %s3 = inlined_call_operand.hbm [shape: f32[2,8,128], index: 3, kind: output, shape index: {}]
  %s4 = sld [smem:[#allocation0]]
  $region22: #{tpu_custom_call.1} parent=0
    _
  %s6 = ssub.s32 1, %s4
  %s7 = scalar_select 0, %s6, %s4
  %8 = sst [smem:[#allocation2]] %s2
  $region1: #{tpu_custom_call.1} parent=0
    #allocation3 [shape = 'u8[8192]{0}', space=vmem, size = 0x2000, scoped, tag = 'output window, operand 0, single buffered']
    #allocation4 [shape = 's32[1]{0}', space=sflag, size = 0x4, scoped, tag = 'scoped memory for tpu_custom_call.1']
    %9 = vsyncpa [#allocation4], 0
    // Predicated region
    $region2: #{tpu_custom_call.1} parent=1 // pred_check
      _
    $region3: #{tpu_custom_call.1} parent=1 // pred_check_branch
      %11 = sbr.rel (0) target = $region5
    $region4: #{tpu_custom_call.1} parent=1 // pred_region
      _
    $region5: #{tpu_custom_call.1} parent=1 // pred_fallthru
      _
    // Predicated region
    $region6: #{tpu_custom_call.1} parent=1 // pred_check
      _
    $region7: #{tpu_custom_call.1} parent=1 // pred_check_branch
      %13 = sbr.rel (0) target = $region9
    $region8: #{tpu_custom_call.1} parent=1 // pred_region
      _
    $region9: #{tpu_custom_call.1} parent=1 // pred_fallthru
      _
    // Predicated region
    $region10: #{tpu_custom_call.1} parent=1 // pred_check
      _
    $region11: #{tpu_custom_call.1} parent=1 // pred_check_branch
      %15 = sbr.rel (0) target = $region13
    $region12: #{tpu_custom_call.1} parent=1 // pred_region
      _
    $region13: #{tpu_custom_call.1} parent=1 // pred_fallthru
      _
    %v16 = vld [vmem:[%s0] sm:$0xff]
    %v17 = vld [vmem:[%s0 + $0x8] sm:$0xff]
    %v18 = vld [vmem:[%s0 + $0x10] sm:$0xff]
    %v19 = vld [vmem:[%s0 + $0x18] sm:$0xff]
    %v20 = vld [vmem:[%s0 + $0x20] sm:$0xff]
    %v21 = vld [vmem:[%s0 + $0x28] sm:$0xff]
    %v22 = vld [vmem:[%s0 + $0x30] sm:$0xff]
    %v23 = vld [vmem:[%s0 + $0x38] sm:$0xff]
    %v24 = vld [vmem:[%s0 + $0x40] sm:$0xff]
    %v25 = vld [vmem:[%s0 + $0x48] sm:$0xff]
    %v26 = vld [vmem:[%s0 + $0x50] sm:$0xff]
    %v27 = vld [vmem:[%s0 + $0x58] sm:$0xff]
    %v28 = vld [vmem:[%s0 + $0x60] sm:$0xff]
    %v29 = vld [vmem:[%s0 + $0x68] sm:$0xff]
    %v30 = vld [vmem:[%s0 + $0x70] sm:$0xff]
    %v31 = vld [vmem:[%s0 + $0x78] sm:$0xff]
    %32 = vxpose.xlu0.b32.start [1/16] %v16, 128
    %33 = vxpose.xlu0.b32.cont [2/16] %v17, 128
    %34 = vxpose.xlu0.b32.cont [3/16] %v18, 128
    %35 = vxpose.xlu0.b32.cont [4/16] %v19, 128
    %36 = vxpose.xlu0.b32.cont [5/16] %v20, 128
    %37 = vxpose.xlu0.b32.cont [6/16] %v21, 128
    %38 = vxpose.xlu0.b32.cont [7/16] %v22, 128
    %39 = vxpose.xlu0.b32.cont [8/16] %v23, 128
    %40 = vxpose.xlu0.b32.cont [9/16] %v24, 128
    %41 = vxpose.xlu0.b32.cont [10/16] %v25, 128
    %42 = vxpose.xlu0.b32.cont [11/16] %v26, 128
    %43 = vxpose.xlu0.b32.cont [12/16] %v27, 128
    %44 = vxpose.xlu0.b32.cont [13/16] %v28, 128
    %45 = vxpose.xlu0.b32.cont [14/16] %v29, 128
    %46 = vxpose.xlu0.b32.cont [15/16] %v30, 128
    %47 = vxpose.xlu0.b32.end [16/16] %v31, 128
    %v48 = vpop.trf.xlu0
    %v49 = vpop.trf.xlu0
    %v50 = vpop.trf.xlu0
    %v51 = vpop.trf.xlu0
    %v52 = vpop.trf.xlu0
    %v53 = vpop.trf.xlu0
    %v54 = vpop.trf.xlu0
    %v55 = vpop.trf.xlu0
    %v56 = vpop.trf.xlu0
    %v57 = vpop.trf.xlu0
    %v58 = vpop.trf.xlu0
    %v59 = vpop.trf.xlu0
    %v60 = vpop.trf.xlu0
    %v61 = vpop.trf.xlu0
    %v62 = vpop.trf.xlu0
    %v63 = vpop.trf.xlu0
    %v64 = vmax.f32 %v48, 0.0
    %v65 = vmax.f32 %v49, 0.0
    %v66 = vmax.f32 %v50, 0.0
    %v67 = vmax.f32 %v51, 0.0
    %v68 = vmax.f32 %v52, 0.0
    %v69 = vmax.f32 %v53, 0.0
    %v70 = vmax.f32 %v54, 0.0
    %v71 = vmax.f32 %v55, 0.0
    %v72 = vmax.f32 %v56, 0.0
    %v73 = vmax.f32 %v57, 0.0
    %v74 = vmax.f32 %v58, 0.0
    %v75 = vmax.f32 %v59, 0.0
    %v76 = vmax.f32 %v60, 0.0
    %v77 = vmax.f32 %v61, 0.0
    %v78 = vmax.f32 %v62, 0.0
    %v79 = vmax.f32 %v63, 0.0
    %v80 = vld [vmem:[%s1] sm:$0xff]
    %v81 = vld [vmem:[%s1 + $0x8] sm:$0xff]
    %v82 = vld [vmem:[%s1 + $0x10] sm:$0xff]
    %v83 = vld [vmem:[%s1 + $0x18] sm:$0xff]
    %v84 = vld [vmem:[%s1 + $0x20] sm:$0xff]
    %v85 = vld [vmem:[%s1 + $0x28] sm:$0xff]
    %v86 = vld [vmem:[%s1 + $0x30] sm:$0xff]
    %v87 = vld [vmem:[%s1 + $0x38] sm:$0xff]
    %v88 = vld [vmem:[%s1 + $0x40] sm:$0xff]
    %v89 = vld [vmem:[%s1 + $0x48] sm:$0xff]
    %v90 = vld [vmem:[%s1 + $0x50] sm:$0xff]
    %v91 = vld [vmem:[%s1 + $0x58] sm:$0xff]
    %v92 = vld [vmem:[%s1 + $0x60] sm:$0xff]
    %v93 = vld [vmem:[%s1 + $0x68] sm:$0xff]
    %v94 = vld [vmem:[%s1 + $0x70] sm:$0xff]
    %v95 = vld [vmem:[%s1 + $0x78] sm:$0xff]
    %97 = vset.pattern.permute.xlu0 0
    %98 = vperm.xlu0 %97, %v80
    %v99 = vpop.permute.xlu0 %98
    %102 = vset.pattern.permute.xlu0 0
    %103 = vperm.xlu0 %102, %v81
    %v104 = vpop.permute.xlu0 %103
    %107 = vset.pattern.permute.xlu0 0
    %108 = vperm.xlu0 %107, %v82
    %v109 = vpop.permute.xlu0 %108
    %112 = vset.pattern.permute.xlu0 0
    %113 = vperm.xlu0 %112, %v83
    %v114 = vpop.permute.xlu0 %113
    %117 = vset.pattern.permute.xlu0 0
    %118 = vperm.xlu0 %117, %v84
    %v119 = vpop.permute.xlu0 %118
    %122 = vset.pattern.permute.xlu0 0
    %123 = vperm.xlu0 %122, %v85
    %v124 = vpop.permute.xlu0 %123
    %127 = vset.pattern.permute.xlu0 0
    %128 = vperm.xlu0 %127, %v86
    %v129 = vpop.permute.xlu0 %128
    %132 = vset.pattern.permute.xlu0 0
    %133 = vperm.xlu0 %132, %v87
    %v134 = vpop.permute.xlu0 %133
    %137 = vset.pattern.permute.xlu0 0
    %138 = vperm.xlu0 %137, %v88
    %v139 = vpop.permute.xlu0 %138
    %142 = vset.pattern.permute.xlu0 0
    %143 = vperm.xlu0 %142, %v89
    %v144 = vpop.permute.xlu0 %143
    %147 = vset.pattern.permute.xlu0 0
    %148 = vperm.xlu0 %147, %v90
    %v149 = vpop.permute.xlu0 %148
    %152 = vset.pattern.permute.xlu0 0
    %153 = vperm.xlu0 %152, %v91
    %v154 = vpop.permute.xlu0 %153
    %157 = vset.pattern.permute.xlu0 0
    %158 = vperm.xlu0 %157, %v92
    %v159 = vpop.permute.xlu0 %158
    %162 = vset.pattern.permute.xlu0 0
    %163 = vperm.xlu0 %162, %v93
    %v164 = vpop.permute.xlu0 %163
    %167 = vset.pattern.permute.xlu0 0
    %168 = vperm.xlu0 %167, %v94
    %v169 = vpop.permute.xlu0 %168
    %172 = vset.pattern.permute.xlu0 0
    %173 = vperm.xlu0 %172, %v95
    %v174 = vpop.permute.xlu0 %173
    %v176 = vmul.f32 %v64, %v99
    %v177 = vmul.f32 %v65, %v104
    %v178 = vmul.f32 %v66, %v109
    %v179 = vmul.f32 %v67, %v114
    %v180 = vmul.f32 %v68, %v119
    %v181 = vmul.f32 %v69, %v124
    %v182 = vmul.f32 %v70, %v129
    %v183 = vmul.f32 %v71, %v134
    %v184 = vmul.f32 %v72, %v139
    %v185 = vmul.f32 %v73, %v144
    %v186 = vmul.f32 %v74, %v149
    %v187 = vmul.f32 %v75, %v154
    %v188 = vmul.f32 %v76, %v159
    %v189 = vmul.f32 %v77, %v164
    %v190 = vmul.f32 %v78, %v169
    %v191 = vmul.f32 %v79, %v174
    %v192 = vadd.f32 %v176, %v177
    %v193 = vrot.slane %v192, 4
    %v194 = vadd.f32 %v192, %v193
    %v195 = vrot.slane %v194, 2
    %v196 = vadd.f32 %v194, %v195
    %v197 = vrot.slane %v196, 1
    %v198 = vadd.f32 %v196, %v197
    %v199 = vadd.f32 %v178, %v179
    %v200 = vrot.slane %v199, 4
    %v201 = vadd.f32 %v199, %v200
    %v202 = vrot.slane %v201, 2
    %v203 = vadd.f32 %v201, %v202
    %v204 = vrot.slane %v203, 1
    %v205 = vadd.f32 %v203, %v204
    %v206 = vadd.f32 %v180, %v181
    %v207 = vrot.slane %v206, 4
    %v208 = vadd.f32 %v206, %v207
    %v209 = vrot.slane %v208, 2
    %v210 = vadd.f32 %v208, %v209
    %v211 = vrot.slane %v210, 1
    %v212 = vadd.f32 %v210, %v211
    %v213 = vadd.f32 %v182, %v183
    %v214 = vrot.slane %v213, 4
    %v215 = vadd.f32 %v213, %v214
    %v216 = vrot.slane %v215, 2
    %v217 = vadd.f32 %v215, %v216
    %v218 = vrot.slane %v217, 1
    %v219 = vadd.f32 %v217, %v218
    %v220 = vadd.f32 %v184, %v185
    %v221 = vrot.slane %v220, 4
    %v222 = vadd.f32 %v220, %v221
    %v223 = vrot.slane %v222, 2
    %v224 = vadd.f32 %v222, %v223
    %v225 = vrot.slane %v224, 1
    %v226 = vadd.f32 %v224, %v225
    %v227 = vadd.f32 %v186, %v187
    %v228 = vrot.slane %v227, 4
    %v229 = vadd.f32 %v227, %v228
    %v230 = vrot.slane %v229, 2
    %v231 = vadd.f32 %v229, %v230
    %v232 = vrot.slane %v231, 1
    %v233 = vadd.f32 %v231, %v232
    %v234 = vadd.f32 %v188, %v189
    %v235 = vrot.slane %v234, 4
    %v236 = vadd.f32 %v234, %v235
    %v237 = vrot.slane %v236, 2
    %v238 = vadd.f32 %v236, %v237
    %v239 = vrot.slane %v238, 1
    %v240 = vadd.f32 %v238, %v239
    %v241 = vadd.f32 %v190, %v191
    %v242 = vrot.slane %v241, 4
    %v243 = vadd.f32 %v241, %v242
    %v244 = vrot.slane %v243, 2
    %v245 = vadd.f32 %v243, %v244
    %v246 = vrot.slane %v245, 1
    %v247 = vadd.f32 %v245, %v246
    %vm248 = vcmask 1040384
    %v249 = vsel %vm248, %v198, %v205
    %vm250 = vcmask 1041408
    %v251 = vsel %vm250, %v249, %v212
    %vm252 = vcmask 1042432
    %v253 = vsel %vm252, %v251, %v219
    %vm254 = vcmask 1043456
    %v255 = vsel %vm254, %v253, %v226
    %vm256 = vcmask 1044480
    %v257 = vsel %vm256, %v255, %v233
    %vm258 = vcmask 1045504
    %v259 = vsel %vm258, %v257, %v240
    %vm260 = vcmask 1046528
    %v261 = vsel %vm260, %v259, %v247
    %s262 = sld [smem:[#allocation2]]
    %v263 = vstv %s262
    %v264 = vadd.f32 %v261, %v263
    %v265 = vmax.f32 %v264, 0.0
    %v266 = vand.u32 2147483647, %v264
    %v267 = vsub.f32 0.0, %v266
    %v268 = vmul.f32 %v267, 1.442695
    %v269 = vpow.pop %v268
    %v270 = vadd.f32 %v269, 1.0
    %v271 = vlog2.pop %v270
    %v272 = vmul.f32 %v271, 0.6931472
    %v273 = vmul.f32 -0.5, %v269
    %v274 = vadd.f32 %v273, 1.0
    %v275 = vmul.f32 %v274, %v269
    %v276 = vand.u32 2147483647, %v269
    %vm277 = vcmp.lt.f32.partialorder %v276, 0.0004427343
    %v278 = vsel %vm277, %v275, %v272
    %v279 = vadd.f32 %v265, %v278
    %v280 = vsub.f32 0.0, %v279
    %281 = vst [vmem:[#allocation3] sm:$0xff] %v280
    %v282 = vsub.f32 %v264, %v279
    %s283 = scalar_lea.vmem [#allocation3], 8
    %284 = vst [vmem:[%s283] sm:$0xff] %v282
    // Predicated region
    $region14: #{tpu_custom_call.1} parent=1 // pred_check
      _
    $region15: #{tpu_custom_call.1} parent=1 // pred_check_branch
      %286 = sbr.rel (0) target = $region17
    $region16: #{tpu_custom_call.1} parent=1 // pred_region
      %s288 = ssub.s32 256, 256
      %289 = vsyncadd [#allocation4], %s288
      %s290 = sshll.u32 [#allocation3], 4
      %s291 = int_to_ptr.vmem [resolvable:$true] %s290
      %296 = dma.vmem_to_hbm [thread:$0]  %s291, 256, %s3, [#allocation4], 128, 128, 8
    $region17: #{tpu_custom_call.1} parent=1 // pred_fallthru
      _
    // Predicated region
    $region18: #{tpu_custom_call.1} parent=1 // pred_check
      _
    $region19: #{tpu_custom_call.1} parent=1 // pred_check_branch
      %298 = sbr.rel (0) target = $region21
    $region20: #{tpu_custom_call.1} parent=1 // pred_region
      %299 = dma.done [#allocation4], 256
    $region21: #{tpu_custom_call.1} parent=1 // pred_fallthru
      _
    %300 = vsyncpa [#allocation4], 1

</llo_original>
